<compile_context>
chip_gen: v7x
topology: tpu7x:2x2x1
jax: 0.10.0
libtpu: 0.0.40
codegen_flags: <defaults>
</compile_context>

<pallas_src>
import jax
import jax.numpy as jnp
from jax.experimental import pallas as pl
from jax.experimental.pallas import tpu as pltpu


def moe_kernel(x_ref, w_ref, r_ref, o_ref):
    # x_ref : (tb, F_in+1)          bf16  (last column is the constant 1.0 -> biases)
    # w_ref : (F_in+1, E*tn + Gpad) bf16  fused slab: [expert cols | gate cols | zero pad]
    # r_ref : (E, E*tn)             f32   0/1 block replication matrix
    # o_ref : (tb, tn)
    n_exp, ew = r_ref.shape          # ew = E * tn
    tn = ew // n_exp

    x = x_ref[...]
    # One wide MXU matmul per step: every expert's columns for this F_out tile
    # plus the gate logits (weights AND biases folded via the ones-column of x).
    y = jnp.dot(x, w_ref[...], preferred_element_type=jnp.float32)    # (tb, E*tn+Gpad) f32

    gate = y[:, ew:ew + n_exp]                                         # (tb, E) raw logits
    # Lane-replicate the gate with one tiny exact (0/1-weight) f32 matmul instead
    # of E cross-lane broadcasts (keeps the epilogue off the XLU).
    gate_rep = jnp.dot(gate, r_ref[...],
                       preferred_element_type=jnp.float32)             # (tb, E*tn)

    prod = gate_rep * y[:, :ew]                                        # (tb, E*tn) f32
    # Gated reduction over experts: lane-aligned whole-vreg slices, pure VPU adds.
    # (For E >> 8, switch this static unroll to lax.fori_loop to bound live ranges.)
    acc = prod[:, :tn]
    for e in range(1, n_exp):
        acc = acc + prod[:, e * tn:(e + 1) * tn]

    o_ref[...] = acc.astype(o_ref.dtype)


def _round_up(v, m):
    return ((v + m - 1) // m) * m


def _vmem_capacity_bytes():
    try:
        return int(pltpu.get_tpu_info().vmem_capacity_bytes)
    except Exception:
        return 64 * 1024 * 1024   # conservative fallback (v7x per-TC VMEM)


def _vmem_needed(tb, tn, f_in, n_exp, gate_pad, out_itemsize, param_bytes):
    tile_w = n_exp * tn + gate_pad
    blocks = (2 * tb * (f_in + 1) * param_bytes        # x tile (double-buffered)
              + 2 * (f_in + 1) * tile_w * param_bytes  # fused weight slab
              + 2 * n_exp * n_exp * tn * 4             # replication matrix (resident)
              + 2 * tb * tn * out_itemsize)            # output tile
    interm = (tb * tile_w * 4                          # wide matmul result
              + 2 * tb * n_exp * tn * 4                # gate_rep + prod
              + tb * tn * 4)                           # acc
    return blocks + interm


def basic_moe(x, wg, bg, we, be, *, tb=None, tn=None, param_dtype=jnp.bfloat16):
    """x:(B,F_in)  wg:(F_in,E)  bg:(1,E)  we:(E,F_in,F_out)  be:(E,F_out)."""
    b, f_in = x.shape
    n_exp, _, f_out = we.shape

    cap = _vmem_capacity_bytes()
    budget = int(0.75 * cap)                 # headroom for compiler/internal scratch
    out_itemsize = jnp.dtype(x.dtype).itemsize
    pbytes = jnp.dtype(param_dtype).itemsize
    gate_pad = _round_up(n_exp, 128)         # gate section padded to a lane multiple
    min_tb = 16 if (b % 16 == 0 and b >= 16) else b

    # F_out tile: prefer 512/256 (256-wide MXU on v6e/v7x), fall back to 128 / full.
    if tn is None:
        tn_cands = [c for c in (512, 256, 128) if f_out % c == 0] or [f_out]
        tn = tn_cands[-1]
        for c in tn_cands:
            if _vmem_needed(min_tb, c, f_in, n_exp, gate_pad, out_itemsize, pbytes) <= budget:
                tn = c
                break
    # Batch tile: largest multiple of 16 that divides B and fits the VMEM budget
    # (after the grid reorder, more batch steps only add overhead and x re-DMA).
    if tb is None:
        tb_cands = [c for c in (1024, 512, 256, 128, 64, 32, 16) if b % c == 0] or [b]
        tb = tb_cands[-1]
        for c in tb_cands:
            if _vmem_needed(c, tn, f_in, n_exp, gate_pad, out_itemsize, pbytes) <= budget:
                tb = c
                break

    assert b % tb == 0 and f_out % tn == 0
    nj, nb = f_out // tn, b // tb
    if nj > 1:
        assert tn % 128 == 0, "F_out tile must be a multiple of 128 when tiling F_out"
    tile_w = n_exp * tn + gate_pad

    # ---- layout plumbing (outside the kernel) ------------------------------
    # x augmented with a ones-column so all biases ride inside the matmul.
    x_aug = jnp.concatenate([x, jnp.ones((b, 1), x.dtype)], axis=1).astype(param_dtype)

    # Expert weights + bias row, e-major within each F_out tile:
    #   slab column (j*tile_w + e*tn + t) row k<F_in == We[e][k, j*tn+t]; row F_in == be[e, j*tn+t]
    w_aug = jnp.concatenate([we, be[:, None, :]], axis=1)             # (E, F_in+1, F_out)
    w_part = (jnp.transpose(w_aug, (1, 0, 2))                         # (F_in+1, E, F_out)
              .reshape(f_in + 1, n_exp, nj, tn)
              .transpose(0, 2, 1, 3)                                  # (F_in+1, nj, E, tn)
              .reshape(f_in + 1, nj, n_exp * tn))
    # Gate weight + gate bias row, zero-padded to gate_pad lanes, replicated per tile.
    wg_aug = jnp.concatenate([wg, bg.reshape(1, n_exp)], axis=0)      # (F_in+1, E)
    g_part = jnp.zeros((f_in + 1, gate_pad), wg_aug.dtype).at[:, :n_exp].set(wg_aug)
    g_part = jnp.broadcast_to(g_part[:, None, :], (f_in + 1, nj, gate_pad))
    slab = (jnp.concatenate([w_part, g_part], axis=2)                 # (F_in+1, nj, tile_w)
            .reshape(f_in + 1, nj * tile_w)
            .astype(param_dtype))

    # 0/1 replication matrix: R[e, e*tn:(e+1)*tn] = 1  (exact lane replication in f32).
    r_mat = (jnp.arange(n_exp * tn)[None, :] // tn ==
             jnp.arange(n_exp)[:, None]).astype(jnp.float32)          # (E, E*tn)

    needed = _vmem_needed(tb, tn, f_in, n_exp, gate_pad, out_itemsize, pbytes)
    vmem_limit = int(min(0.8 * cap, max(needed + 4 * 1024 * 1024, 32 * 1024 * 1024)))

    # F_out tiles OUTER / batch INNER: slab block index depends only on j, so it is
    # fetched once per j and stays VMEM-resident across all batch steps.
    grid = (nj, nb)
    # Keep the slab-reuse axis "parallel" so v7x's two TensorCores split disjoint
    # j tiles (each streams a different half of the expert weights).
    sem = ("parallel", "arbitrary") if nj > 1 else ("parallel", "parallel")

    return pl.pallas_call(
        moe_kernel,
        out_shape=jax.ShapeDtypeStruct((b, f_out), x.dtype),
        grid_spec=pltpu.PrefetchScalarGridSpec(
            num_scalar_prefetch=0,
            grid=grid,
            in_specs=[
                pl.BlockSpec((tb, f_in + 1), lambda j, i: (i, 0)),       # x tile
                pl.BlockSpec((f_in + 1, tile_w), lambda j, i: (0, j)),   # fused weight slab
                pl.BlockSpec((n_exp, n_exp * tn), lambda j, i: (0, 0)),  # replication matrix
            ],
            out_specs=pl.BlockSpec((tb, tn), lambda j, i: (i, j)),
        ),
        compiler_params=pltpu.CompilerParams(
            dimension_semantics=sem,
            vmem_limit_bytes=vmem_limit),
    )(x_aug, slab, r_mat)


def reference_moe(x, wg, bg, we, be, param_dtype=jnp.bfloat16):
    # Mirror the kernel's bf16 rounding of the compute operands; math in f32.
    f32 = jnp.float32
    xq = x.astype(param_dtype).astype(f32)
    wgq = wg.astype(param_dtype).astype(f32)
    bgq = bg.astype(param_dtype).astype(f32)
    weq = we.astype(param_dtype).astype(f32)
    beq = be.astype(param_dtype).astype(f32)
    hi = jax.lax.Precision.HIGHEST
    gate = jnp.dot(xq, wgq, precision=hi) + bgq                            # (B, E)
    expert_out = jnp.einsum("bi,eio->beo", xq, weq, precision=hi) + beq[None]
    return jnp.einsum("be,beo->bo", gate, expert_out, precision=hi)


if __name__ == "__main__":
    # Small shapes consistent with the module (Linear: F_IN -> F_OUT, E experts).
    B, F_IN, F_OUT, E = 16, 64, 128, 4

    key = jax.random.PRNGKey(0)
    k_x, k_wg, k_bg, k_we, k_be = jax.random.split(key, 5)

    x = jax.random.normal(k_x, (B, F_IN), dtype=jnp.float32)
    # deterministic synthetic parameters (stand-ins for nn.Linear weights/biases)
    wg = jax.random.normal(k_wg, (F_IN, E), dtype=jnp.float32) * 0.1          # gate.weight^T
    bg = jax.random.normal(k_bg, (1, E), dtype=jnp.float32) * 0.1             # gate.bias
    we = jax.random.normal(k_we, (E, F_IN, F_OUT), dtype=jnp.float32) * 0.1   # experts[e].weight^T
    be = jax.random.normal(k_be, (E, F_OUT), dtype=jnp.float32) * 0.1         # experts[e].bias

    out = jax.block_until_ready(basic_moe(x, wg, bg, we, be))
    ref = reference_moe(x, wg, bg, we, be)

    assert out.shape == (B, F_OUT)
    err = float(jnp.max(jnp.abs(out - ref)))
    assert jnp.allclose(out, ref, atol=1e-2, rtol=1e-2), err

    print("KERNEL_OK")
</pallas_src>

<mosaic_0001>
module attributes {stable_mosaic.version = 11 : i64} {
  func.func @moe_kernel(%arg0: i32, %arg1: i32, %arg2: memref<16x65xbf16, #tpu.memory_space<vmem>>, %arg3: memref<65x640xbf16, #tpu.memory_space<vmem>>, %arg4: memref<4x512xf32, #tpu.memory_space<vmem>>, %arg5: memref<16x128xf32, #tpu.memory_space<vmem>>) attributes {dimension_semantics = [#tpu.dimension_semantics<parallel>, #tpu.dimension_semantics<parallel>], iteration_bounds = array<i64: 1, 1>, scalar_prefetch = 0 : i64, scratch_operands = 0 : i64, tpu.core_type = #tpu.core_type<tc>, window_params = [{transform_indices = @transform_0, window_bounds = array<i64: 16, 65>}, {transform_indices = @transform_1, window_bounds = array<i64: 65, 640>}, {pipeline_mode = #tpu.pipeline_mode<synchronous>, transform_indices = @transform_2, window_bounds = array<i64: 4, 512>}, {transform_indices = @transform_3, window_bounds = array<i64: 16, 128>}]} {
    %c0 = arith.constant 0 : index
    %c0_0 = arith.constant 0 : index
    %0 = vector.load %arg2[%c0, %c0_0] : memref<16x65xbf16, #tpu.memory_space<vmem>>, vector<16x65xbf16>
    %c0_1 = arith.constant 0 : index
    %c0_2 = arith.constant 0 : index
    %1 = vector.load %arg3[%c0_1, %c0_2] : memref<65x640xbf16, #tpu.memory_space<vmem>>, vector<65x640xbf16>
    %cst = arith.constant dense<0.000000e+00> : vector<16x640xf32>
    %2 = tpu.matmul %0, %1, %cst {dimension_numbers = #tpu.dot_dimension_numbers<[1], [0], [0], [1], [0, 0, 1, 1], [], []>} : vector<16x65xbf16>, vector<65x640xbf16>, vector<16x640xf32> -> vector<16x640xf32>
    %3 = vector.extract_strided_slice %2 {offsets = [0, 512], sizes = [16, 4], strides = [1, 1]} : vector<16x640xf32> to vector<16x4xf32>
    %c0_3 = arith.constant 0 : index
    %c0_4 = arith.constant 0 : index
    %4 = vector.load %arg4[%c0_3, %c0_4] : memref<4x512xf32, #tpu.memory_space<vmem>>, vector<4x512xf32>
    %cst_5 = arith.constant dense<0.000000e+00> : vector<16x512xf32>
    %5 = tpu.matmul %3, %4, %cst_5 {dimension_numbers = #tpu.dot_dimension_numbers<[1], [0], [0], [1], [0, 0, 1, 1], [], []>} : vector<16x4xf32>, vector<4x512xf32>, vector<16x512xf32> -> vector<16x512xf32>
    %6 = vector.extract_strided_slice %2 {offsets = [0, 0], sizes = [16, 512], strides = [1, 1]} : vector<16x640xf32> to vector<16x512xf32>
    %7 = arith.mulf %5, %6 : vector<16x512xf32>
    %8 = vector.extract_strided_slice %7 {offsets = [0, 0], sizes = [16, 128], strides = [1, 1]} : vector<16x512xf32> to vector<16x128xf32>
    %9 = vector.extract_strided_slice %7 {offsets = [0, 128], sizes = [16, 128], strides = [1, 1]} : vector<16x512xf32> to vector<16x128xf32>
    %10 = arith.addf %8, %9 : vector<16x128xf32>
    %11 = vector.extract_strided_slice %7 {offsets = [0, 256], sizes = [16, 128], strides = [1, 1]} : vector<16x512xf32> to vector<16x128xf32>
    %12 = arith.addf %10, %11 : vector<16x128xf32>
    %13 = vector.extract_strided_slice %7 {offsets = [0, 384], sizes = [16, 128], strides = [1, 1]} : vector<16x512xf32> to vector<16x128xf32>
    %14 = arith.addf %12, %13 : vector<16x128xf32>
    %c0_6 = arith.constant 0 : index
    %c0_7 = arith.constant 0 : index
    %15 = vector.load %arg5[%c0_6, %c0_7] : memref<16x128xf32, #tpu.memory_space<vmem>>, vector<16x128xf32>
    tpu.vector_store %arg5[%c0_6, %c0_7], %14 {strides = array<i32>} : memref<16x128xf32, #tpu.memory_space<vmem>>, vector<16x128xf32>,
    return
  }
  func.func @transform_0(%arg0: i32, %arg1: i32) -> (i32, i32) {
    %c0_i32 = arith.constant 0 : i32
    %c0_i32_0 = arith.constant 0 : i32
    return %arg1, %c0_i32 : i32, i32
  }
  func.func @transform_1(%arg0: i32, %arg1: i32) -> (i32, i32) {
    %c0_i32 = arith.constant 0 : i32
    %c0_i32_0 = arith.constant 0 : i32
    return %c0_i32, %arg0 : i32, i32
  }
  func.func @transform_2(%arg0: i32, %arg1: i32) -> (i32, i32) {
    %c0_i32 = arith.constant 0 : i32
    %c0_i32_0 = arith.constant 0 : i32
    %c0_i32_1 = arith.constant 0 : i32
    return %c0_i32, %c0_i32_0 : i32, i32
  }
  func.func @transform_3(%arg0: i32, %arg1: i32) -> (i32, i32) {
    %c0_i32 = arith.constant 0 : i32
    return %arg1, %arg0 : i32, i32
  }
}

</mosaic_0001>

<llo_original>
// kernel: tpu_custom_call.1
$region0: #{tpu_custom_call.1}
  #allocation0 [shape = 'u32[]', space=smem, size = 0x4, offset = 0x4, fixed_abs, tag = 'smem constant byte address 0x4 - core index']
  #allocation1 [shape = 'u32[144,128]{1,0:T(1,128)}', space=vmem, size = 0x12000, scoped, tag = 'internal scratch']
  %s0 = inlined_call_operand.hbm [shape: bf16[16,65], index: 0, kind: input, shape index: {}]
  %s1 = inlined_call_operand.hbm [shape: bf16[65,640], index: 1, kind: input, shape index: {}]
  %s2 = inlined_call_operand.hbm [shape: f32[4,512], index: 2, kind: input, shape index: {}]
  %s3 = inlined_call_operand.hbm [shape: f32[16,128], index: 3, kind: output, shape index: {}]
  %s4 = sld [smem:[#allocation0]]
  $region34: #{tpu_custom_call.1} parent=0
    _
  %s6 = ssub.s32 1, %s4
  %s7 = scalar_select 0, %s6, %s4
  $region1: #{tpu_custom_call.1} parent=0
    #allocation2 [shape = 'u8[4096]{0}', space=vmem, size = 0x1000, scoped, tag = 'input window, operand 0, single buffered']
    #allocation3 [shape = 's32[1]{0}', space=sflag, size = 0x4, scoped, tag = 'scoped memory for tpu_custom_call.1']
    #allocation4 [shape = 's32[1]{0}', space=sflag, size = 0x4, scoped, tag = 'scoped memory for tpu_custom_call.1']
    #allocation5 [shape = 'u8[92160]{0}', space=vmem, size = 0x16800, scoped, tag = 'input window, operand 1, single buffered']
    #allocation6 [shape = 's32[1]{0}', space=sflag, size = 0x4, scoped, tag = 'scoped memory for tpu_custom_call.1']
    #allocation7 [shape = 'u8[8192]{0}', space=vmem, size = 0x2000, scoped, tag = 'input window, operand 2, single buffered']
    #allocation8 [shape = 'u8[8192]{0}', space=vmem, size = 0x2000, scoped, tag = 'output window, operand 0, single buffered']
    %8 = vsyncpa [#allocation3], 0
    %9 = vsyncpa [#allocation6], 0
    %10 = vsyncpa [#allocation4], 0
    // Predicated region
    $region2: #{tpu_custom_call.1} parent=1 // pred_check
      _
    $region3: #{tpu_custom_call.1} parent=1 // pred_check_branch
      %12 = sbr.rel (0) target = $region5
    $region4: #{tpu_custom_call.1} parent=1 // pred_region
      %s14 = ssub.s32 128, 128
      %15 = vsyncadd [#allocation3], %s14
      %s16 = sshll.u32 [#allocation2], 4
      %s17 = int_to_ptr.vmem [resolvable:$true] %s16
      %22 = dma.hbm_to_vmem [thread:$0]  %s0, 128, %s17, [#allocation3], 64, 64, 4
    $region5: #{tpu_custom_call.1} parent=1 // pred_fallthru
      _
    // Predicated region
    $region6: #{tpu_custom_call.1} parent=1 // pred_check
      _
    $region7: #{tpu_custom_call.1} parent=1 // pred_check_branch
      %24 = sbr.rel (0) target = $region9
    $region8: #{tpu_custom_call.1} parent=1 // pred_region
      %s26 = ssub.s32 2880, 2880
      %27 = vsyncadd [#allocation6], %s26
      %s28 = sshll.u32 [#allocation5], 4
      %s29 = int_to_ptr.vmem [resolvable:$true] %s28
      %34 = dma.hbm_to_vmem [thread:$0]  %s1, 2880, %s29, [#allocation6], 320, 320, 20
    $region9: #{tpu_custom_call.1} parent=1 // pred_fallthru
      _
    // Predicated region
    $region10: #{tpu_custom_call.1} parent=1 // pred_check
      _
    $region11: #{tpu_custom_call.1} parent=1 // pred_check_branch
      %36 = sbr.rel (0) target = $region13
    $region12: #{tpu_custom_call.1} parent=1 // pred_region
      %s38 = ssub.s32 256, 256
      %39 = vsyncadd [#allocation6], %s38
      %s41 = sshll.u32 [#allocation7], 4
      %s42 = int_to_ptr.vmem [resolvable:$true] %s41
      %44 = dma.hbm_to_vmem [thread:$0]  %s2, 256, %s42, [#allocation6]
    $region13: #{tpu_custom_call.1} parent=1 // pred_fallthru
      _
    // Predicated region
    $region14: #{tpu_custom_call.1} parent=1 // pred_check
      _
    $region15: #{tpu_custom_call.1} parent=1 // pred_check_branch
      %46 = sbr.rel (0) target = $region17
    $region16: #{tpu_custom_call.1} parent=1 // pred_region
      %47 = dma.done [#allocation3], 128
    $region17: #{tpu_custom_call.1} parent=1 // pred_fallthru
      _
    // Predicated region
    $region18: #{tpu_custom_call.1} parent=1 // pred_check
      _
    $region19: #{tpu_custom_call.1} parent=1 // pred_check_branch
      %49 = sbr.rel (0) target = $region21
    $region20: #{tpu_custom_call.1} parent=1 // pred_region
      %50 = dma.done [#allocation6], 2880
    $region21: #{tpu_custom_call.1} parent=1 // pred_fallthru
      _
    // Predicated region
    $region22: #{tpu_custom_call.1} parent=1 // pred_check
      _
    $region23: #{tpu_custom_call.1} parent=1 // pred_check_branch
      %52 = sbr.rel (0) target = $region25
    $region24: #{tpu_custom_call.1} parent=1 // pred_region
      %53 = dma.done [#allocation6], 256
    $region25: #{tpu_custom_call.1} parent=1 // pred_fallthru
      _
    %v55 = vld [vmem:[#allocation2] sm:$0xf]
    %v56 = vld [vmem:[#allocation2 + $0x4] sm:$0xf]
    %v57 = vld [vmem:[#allocation5] sm:$0xff]
    %v58 = vld [vmem:[#allocation5 + $0x8] sm:$0xff]
    %v59 = vld [vmem:[#allocation5 + $0x10] sm:$0xf]
    %v60 = vld [vmem:[#allocation5 + $0x14] sm:$0xff]
    %v61 = vld [vmem:[#allocation5 + $0x1c] sm:$0xff]
    %v62 = vld [vmem:[#allocation5 + $0x24] sm:$0xf]
    %v63 = vld [vmem:[#allocation5 + $0x28] sm:$0xff]
    %v64 = vld [vmem:[#allocation5 + $0x30] sm:$0xff]
    %v65 = vld [vmem:[#allocation5 + $0x38] sm:$0xf]
    %v66 = vld [vmem:[#allocation5 + $0x3c] sm:$0xff]
    %v67 = vld [vmem:[#allocation5 + $0x44] sm:$0xff]
    %v68 = vld [vmem:[#allocation5 + $0x4c] sm:$0xf]
    %v69 = vld [vmem:[#allocation5 + $0x50] sm:$0xff]
    %v70 = vld [vmem:[#allocation5 + $0x58] sm:$0xff]
    %v71 = vld [vmem:[#allocation5 + $0x60] sm:$0xf]
    %v72 = vld [vmem:[#allocation5 + $0x64] sm:$0xff]
    %v73 = vld [vmem:[#allocation5 + $0x6c] sm:$0xff]
    %v74 = vld [vmem:[#allocation5 + $0x74] sm:$0xf]
    %v75 = vld [vmem:[#allocation5 + $0x78] sm:$0xff]
    %v76 = vld [vmem:[#allocation5 + $0x80] sm:$0xff]
    %v77 = vld [vmem:[#allocation5 + $0x88] sm:$0xf]
    %v78 = vld [vmem:[#allocation5 + $0x8c] sm:$0xff]
    %v79 = vld [vmem:[#allocation5 + $0x94] sm:$0xff]
    %v80 = vld [vmem:[#allocation5 + $0x9c] sm:$0xf]
    %v81 = vld [vmem:[#allocation5 + $0xa0] sm:$0x11]
    %v82 = vld [vmem:[#allocation5 + $0xa8] sm:$0x11]
    %v83 = vld [vmem:[#allocation5 + $0xb0] sm:$0x1]
    %v86 = vunpack.c.l.b16 %v55
    %v87 = vunpack.c.l.b16 %v56
    %v88 = vpack.c.b16 %v87, %v86
    %v116 = vunpack.c.l.b16 %v57
    %v117 = vunpack.c.h.b16 %v57
    %v118 = vunpack.c.l.b16 %v58
    %v119 = vunpack.c.h.b16 %v58
    %v120 = vunpack.c.l.b16 %v59
    %v121 = vunpack.c.l.b16 %v60
    %v122 = vunpack.c.h.b16 %v60
    %v123 = vunpack.c.l.b16 %v61
    %v124 = vunpack.c.h.b16 %v61
    %v125 = vunpack.c.l.b16 %v62
    %v126 = vunpack.c.l.b16 %v63
    %v127 = vunpack.c.h.b16 %v63
    %v128 = vunpack.c.l.b16 %v64
    %v129 = vunpack.c.h.b16 %v64
    %v130 = vunpack.c.l.b16 %v65
    %v131 = vunpack.c.l.b16 %v66
    %v132 = vunpack.c.h.b16 %v66
    %v133 = vunpack.c.l.b16 %v67
    %v134 = vunpack.c.h.b16 %v67
    %v135 = vunpack.c.l.b16 %v68
    %v136 = vunpack.c.l.b16 %v69
    %v137 = vunpack.c.h.b16 %v69
    %v138 = vunpack.c.l.b16 %v70
    %v139 = vunpack.c.h.b16 %v70
    %v140 = vunpack.c.l.b16 %v71
    %v141 = vunpack.c.l.b16 %v72
    %v142 = vunpack.c.h.b16 %v72
    %v143 = vunpack.c.l.b16 %v73
    %v144 = vunpack.c.h.b16 %v73
    %v145 = vunpack.c.l.b16 %v74
    %v146 = vunpack.c.l.b16 %v75
    %v147 = vunpack.c.h.b16 %v75
    %v148 = vunpack.c.l.b16 %v76
    %v149 = vunpack.c.h.b16 %v76
    %v150 = vunpack.c.l.b16 %v77
    %v151 = vunpack.c.l.b16 %v78
    %v152 = vunpack.c.h.b16 %v78
    %v153 = vunpack.c.l.b16 %v79
    %v154 = vunpack.c.h.b16 %v79
    %v155 = vunpack.c.l.b16 %v80
    %v156 = vunpack.c.l.b16 %v81
    %v157 = vunpack.c.h.b16 %v81
    %v158 = vunpack.c.l.b16 %v82
    %v159 = vunpack.c.h.b16 %v82
    %v160 = vunpack.c.l.b16 %v83
    %v161 = vpack.c.b16 %v121, %v116
    %v162 = vpack.c.b16 %v122, %v117
    %v163 = vpack.c.b16 %v123, %v118
    %v164 = vpack.c.b16 %v124, %v119
    %v165 = vpack.c.b16 %v125, %v120
    %v166 = vpack.c.b16 %v131, %v126
    %v167 = vpack.c.b16 %v132, %v127
    %v168 = vpack.c.b16 %v133, %v128
    %v169 = vpack.c.b16 %v134, %v129
    %v170 = vpack.c.b16 %v135, %v130
    %v171 = vpack.c.b16 %v141, %v136
    %v172 = vpack.c.b16 %v142, %v137
    %v173 = vpack.c.b16 %v143, %v138
    %v174 = vpack.c.b16 %v144, %v139
    %v175 = vpack.c.b16 %v145, %v140
    %v176 = vpack.c.b16 %v151, %v146
    %v177 = vpack.c.b16 %v152, %v147
    %v178 = vpack.c.b16 %v153, %v148
    %v179 = vpack.c.b16 %v154, %v149
    %v180 = vpack.c.b16 %v155, %v150
    %v181 = vpack.c.b16 %v156, %v156
    %v182 = vpack.c.b16 %v157, %v157
    %v183 = vpack.c.b16 %v158, %v158
    %v184 = vpack.c.b16 %v159, %v159
    %v185 = vpack.c.b16 %v160, %v160
    %vm206 = vcmask 531456
    %v208 = vsel %vm206, %v88, 0
    %vm210 = vcmask 1040384
    %v211 = vsel 0, 4294967295, 65535
    %v212 = vsel %vm210, %v211, 0
    %v214 = vand.u32 %v181, %v212
    %v217 = vand.u32 %v182, %v212
    %v220 = vand.u32 %v183, %v212
    %v223 = vand.u32 %v184, %v212
    %v226 = vand.u32 %v185, %v212
    %228 = vmatprep.subr.bf16.mxu0 %v162
    %229 = vmatpush1.bf16.msra.mxu0 %v161
    %230 = vmatprep.subr.bf16.mxu0 %v167
    %231 = vmatpush1.bf16.msra.mxu0 %v166
    %232 = vmatprep.subr.bf16.mxu0 %v172
    %233 = vmatpush1.bf16.msra.mxu0 %v171
    %234 = vmatprep.subr.bf16.mxu0 %v177
    %235 = vmatpush1.bf16.msra.mxu0 %v176
    %236 = vmatprep.subr.bf16.mxu0 %v217
    %237 = vmatpush1.bf16.msra.mxu0 %v214
    %238 = vmatprep.subr.bf16.mxu0 0
    %239 = vmatpush1.bf16.msra.mxu0 0
    %240 = vmatprep.subr.bf16.mxu0 0
    %241 = vmatpush1.bf16.msra.mxu0 0
    %242 = vmatprep.subr.bf16.mxu0 0
    %243 = vmatpush1.bf16.msra.mxu0 0
    %244 = vmatprep.subr.bf16.mxu0 0
    %245 = vmatpush1.bf16.msra.mxu0 0
    %246 = vmatprep.subr.bf16.mxu0 0
    %247 = vmatpush1.bf16.msra.mxu0 0
    %248 = vmatprep.subr.bf16.mxu0 0
    %249 = vmatpush1.bf16.msra.mxu0 0
    %250 = vmatprep.subr.bf16.mxu0 0
    %251 = vmatpush1.bf16.msra.mxu0 0
    %252 = vmatprep.subr.bf16.mxu0 0
    %253 = vmatpush1.bf16.msra.mxu0 0
    %254 = vmatprep.subr.bf16.mxu0 0
    %255 = vmatpush1.bf16.msra.mxu0 0
    %256 = vmatprep.subr.bf16.mxu0 0
    %257 = vmatpush1.bf16.msra.mxu0 0
    %258 = vmatprep.subr.bf16.mxu0 0
    %259 = vmatpush1.bf16.msra.mxu0 0
    %260 = vmatprep.mubr.bf16.mxu0 0
    %261 = vmatmul.mubr.bf16.gmra.mrb[0].mxu0 %v208
    %v262 = vpop.f32.mrb[0].mxu0
    %v263 = vadd.f32 0.0, %v262
    %v264 = vpop.f32.mrb[0].mxu0
    %v265 = vadd.f32 0.0, %v264
    %v266 = vpop.f32.mrb[0].mxu0
    %v267 = vadd.f32 0.0, %v266
    %v268 = vpop.f32.mrb[0].mxu0
    %v269 = vadd.f32 0.0, %v268
    %270 = vdwg.mxu0
    %271 = vmatprep.subr.bf16.mxu0 %v164
    %272 = vmatpush1.bf16.msra.mxu0 %v163
    %273 = vmatprep.subr.bf16.mxu0 %v169
    %274 = vmatpush1.bf16.msra.mxu0 %v168
    %275 = vmatprep.subr.bf16.mxu0 %v174
    %276 = vmatpush1.bf16.msra.mxu0 %v173
    %277 = vmatprep.subr.bf16.mxu0 %v179
    %278 = vmatpush1.bf16.msra.mxu0 %v178
    %279 = vmatprep.subr.bf16.mxu0 %v223
    %280 = vmatpush1.bf16.msra.mxu0 %v220
    %281 = vmatprep.subr.bf16.mxu0 0
    %282 = vmatpush1.bf16.msra.mxu0 0
    %283 = vmatprep.subr.bf16.mxu0 0
    %284 = vmatpush1.bf16.msra.mxu0 0
    %285 = vmatprep.subr.bf16.mxu0 0
    %286 = vmatpush1.bf16.msra.mxu0 0
    %287 = vmatprep.subr.bf16.mxu0 0
    %288 = vmatpush1.bf16.msra.mxu0 0
    %289 = vmatprep.subr.bf16.mxu0 0
    %290 = vmatpush1.bf16.msra.mxu0 0
    %291 = vmatprep.subr.bf16.mxu0 0
    %292 = vmatpush1.bf16.msra.mxu0 0
    %293 = vmatprep.subr.bf16.mxu0 0
    %294 = vmatpush1.bf16.msra.mxu0 0
    %295 = vmatprep.subr.bf16.mxu0 0
    %296 = vmatpush1.bf16.msra.mxu0 0
    %297 = vmatprep.subr.bf16.mxu0 0
    %298 = vmatpush1.bf16.msra.mxu0 0
    %299 = vmatprep.subr.bf16.mxu0 0
    %300 = vmatpush1.bf16.msra.mxu0 0
    %301 = vmatprep.subr.bf16.mxu0 0
    %302 = vmatpush1.bf16.msra.mxu0 0
    %303 = vmatprep.mubr.bf16.mxu0 0
    %304 = vmatmul.mubr.bf16.gmra.mrb[0].mxu0 %v208
    %v305 = vpop.f32.mrb[0].mxu0
    %v306 = vadd.f32 0.0, %v305
    %v307 = vpop.f32.mrb[0].mxu0
    %v308 = vadd.f32 0.0, %v307
    %v309 = vpop.f32.mrb[0].mxu0
    %v310 = vadd.f32 0.0, %v309
    %v311 = vpop.f32.mrb[0].mxu0
    %v312 = vadd.f32 0.0, %v311
    %313 = vdwg.mxu0
    %314 = vmatprep.subr.bf16.mxu0 0
    %315 = vmatpush1.bf16.msra.mxu0 %v165
    %316 = vmatprep.subr.bf16.mxu0 0
    %317 = vmatpush1.bf16.msra.mxu0 %v170
    %318 = vmatprep.subr.bf16.mxu0 0
    %319 = vmatpush1.bf16.msra.mxu0 %v175
    %320 = vmatprep.subr.bf16.mxu0 0
    %321 = vmatpush1.bf16.msra.mxu0 %v180
    %322 = vmatprep.subr.bf16.mxu0 0
    %323 = vmatpush1.bf16.msra.mxu0 %v226
    %324 = vmatprep.subr.bf16.mxu0 0
    %325 = vmatpush1.bf16.msra.mxu0 0
    %326 = vmatprep.subr.bf16.mxu0 0
    %327 = vmatpush1.bf16.msra.mxu0 0
    %328 = vmatprep.subr.bf16.mxu0 0
    %329 = vmatpush1.bf16.msra.mxu0 0
    %330 = vmatprep.subr.bf16.mxu0 0
    %331 = vmatpush1.bf16.msra.mxu0 0
    %332 = vmatprep.subr.bf16.mxu0 0
    %333 = vmatpush1.bf16.msra.mxu0 0
    %334 = vmatprep.subr.bf16.mxu0 0
    %335 = vmatpush1.bf16.msra.mxu0 0
    %336 = vmatprep.subr.bf16.mxu0 0
    %337 = vmatpush1.bf16.msra.mxu0 0
    %338 = vmatprep.subr.bf16.mxu0 0
    %339 = vmatpush1.bf16.msra.mxu0 0
    %340 = vmatprep.subr.bf16.mxu0 0
    %341 = vmatpush1.bf16.msra.mxu0 0
    %342 = vmatprep.subr.bf16.mxu0 0
    %343 = vmatpush1.bf16.msra.mxu0 0
    %344 = vmatprep.subr.bf16.mxu0 0
    %345 = vmatpush1.bf16.msra.mxu0 0
    %346 = vmatprep.mubr.bf16.mxu0 0
    %347 = vmatmul.mubr.bf16.gmra.mrb[0].mxu0 %v208
    %v348 = vpop.f32.mrb[0].mxu0
    %v349 = vadd.f32 0.0, %v348
    %v350 = vpop.f32.mrb[0].mxu0
    %v351 = vpop.f32.mrb[0].mxu0
    %v352 = vadd.f32 0.0, %v351
    %v353 = vpop.f32.mrb[0].mxu0
    %354 = vdwg.mxu0
    %v355 = vld [vmem:[#allocation7] sm:$0xff]
    %v356 = vld [vmem:[#allocation7 + $0x8] sm:$0xff]
    %v359 = vcombine.high %v355, %v355
    %v360 = vcombine.high %v356, %v356
    %vm361 = vcmask 31744
    %v363 = vsel %vm361, %v349, 0
    %v366 = vsel %vm361, %v352, 0
    %vm368 = vcmask 1043456
    %v369 = vsel %vm368, %v355, 0
    %v371 = vsel %vm368, %v359, 0
    %v373 = vsel %vm368, %v356, 0
    %v375 = vsel %vm368, %v360, 0
    %377 = vmatprep.subr.mxu0 %v371
    %378 = vmatpush1.msra.mxu0 %v369
    %379 = vmatprep.subr.mxu0 0.0
    %380 = vmatpush1.msra.mxu0 0.0
    %381 = vmatprep.subr.mxu0 0.0
    %382 = vmatpush1.msra.mxu0 0.0
    %383 = vmatprep.subr.mxu0 0.0
    %384 = vmatpush1.msra.mxu0 0.0
    %385 = vmatprep.subr.mxu0 0.0
    %386 = vmatpush1.msra.mxu0 0.0
    %387 = vmatprep.subr.mxu0 0.0
    %388 = vmatpush1.msra.mxu0 0.0
    %389 = vmatprep.subr.mxu0 0.0
    %390 = vmatpush1.msra.mxu0 0.0
    %391 = vmatprep.subr.mxu0 0.0
    %392 = vmatpush1.msra.mxu0 0.0
    %393 = vmatprep.subr.mxu0 0.0
    %394 = vmatpush1.msra.mxu0 0.0
    %395 = vmatprep.subr.mxu0 0.0
    %396 = vmatpush1.msra.mxu0 0.0
    %397 = vmatprep.subr.mxu0 0.0
    %398 = vmatpush1.msra.mxu0 0.0
    %399 = vmatprep.subr.mxu0 0.0
    %400 = vmatpush1.msra.mxu0 0.0
    %401 = vmatprep.subr.mxu0 0.0
    %402 = vmatpush1.msra.mxu0 0.0
    %403 = vmatprep.subr.mxu0 0.0
    %404 = vmatpush1.msra.mxu0 0.0
    %405 = vmatprep.subr.mxu0 0.0
    %406 = vmatpush1.msra.mxu0 0.0
    %407 = vmatprep.subr.mxu0 0.0
    %408 = vmatpush1.msra.mxu0 0.0
    %409 = vmatprep.subr.mxu0 0.0
    %410 = vmatpush1.msra.mxu0 0.0
    %411 = vmatprep.subr.mxu0 0.0
    %412 = vmatpush1.msra.mxu0 0.0
    %413 = vmatprep.subr.mxu0 0.0
    %414 = vmatpush1.msra.mxu0 0.0
    %415 = vmatprep.subr.mxu0 0.0
    %416 = vmatpush1.msra.mxu0 0.0
    %417 = vmatprep.subr.mxu0 0.0
    %418 = vmatpush1.msra.mxu0 0.0
    %419 = vmatprep.subr.mxu0 0.0
    %420 = vmatpush1.msra.mxu0 0.0
    %421 = vmatprep.subr.mxu0 0.0
    %422 = vmatpush1.msra.mxu0 0.0
    %423 = vmatprep.subr.mxu0 0.0
    %424 = vmatpush1.msra.mxu0 0.0
    %425 = vmatprep.subr.mxu0 0.0
    %426 = vmatpush1.msra.mxu0 0.0
    %427 = vmatprep.subr.mxu0 0.0
    %428 = vmatpush1.msra.mxu0 0.0
    %429 = vmatprep.subr.mxu0 0.0
    %430 = vmatpush1.msra.mxu0 0.0
    %431 = vmatprep.subr.mxu0 0.0
    %432 = vmatpush1.msra.mxu0 0.0
    %433 = vmatprep.subr.mxu0 0.0
    %434 = vmatpush1.msra.mxu0 0.0
    %435 = vmatprep.subr.mxu0 0.0
    %436 = vmatpush1.msra.mxu0 0.0
    %437 = vmatprep.subr.mxu0 0.0
    %438 = vmatpush1.msra.mxu0 0.0
    %439 = vmatprep.subr.mxu0 0.0
    %440 = vmatpush1.msra.mxu0 0.0
    %441 = vmatprep.mubr.f32.mxu0 0.0
    %442 = vmatmul.mubr.f32.gmra.mrb[0].mxu0 %v363
    %v443 = vpop.f32.mrb[0].mxu0
    %v444 = vadd.f32 0.0, %v443
    %v445 = vpop.f32.mrb[0].mxu0
    %v446 = vadd.f32 0.0, %v445
    %447 = vmatprep.mubr.f32.mxu0 0.0
    %448 = vmatmul.mubr.f32.gmra.mrb[0].mxu0 %v366
    %v449 = vpop.f32.mrb[0].mxu0
    %v450 = vadd.f32 0.0, %v449
    %v451 = vpop.f32.mrb[0].mxu0
    %v452 = vadd.f32 0.0, %v451
    %453 = vdwg.mxu0
    %454 = vmatprep.subr.mxu0 %v375
    %455 = vmatpush1.msra.mxu0 %v373
    %456 = vmatprep.subr.mxu0 0.0
    %457 = vmatpush1.msra.mxu0 0.0
    %458 = vmatprep.subr.mxu0 0.0
    %459 = vmatpush1.msra.mxu0 0.0
    %460 = vmatprep.subr.mxu0 0.0
    %461 = vmatpush1.msra.mxu0 0.0
    %462 = vmatprep.subr.mxu0 0.0
    %463 = vmatpush1.msra.mxu0 0.0
    %464 = vmatprep.subr.mxu0 0.0
    %465 = vmatpush1.msra.mxu0 0.0
    %466 = vmatprep.subr.mxu0 0.0
    %467 = vmatpush1.msra.mxu0 0.0
    %468 = vmatprep.subr.mxu0 0.0
    %469 = vmatpush1.msra.mxu0 0.0
    %470 = vmatprep.subr.mxu0 0.0
    %471 = vmatpush1.msra.mxu0 0.0
    %472 = vmatprep.subr.mxu0 0.0
    %473 = vmatpush1.msra.mxu0 0.0
    %474 = vmatprep.subr.mxu0 0.0
    %475 = vmatpush1.msra.mxu0 0.0
    %476 = vmatprep.subr.mxu0 0.0
    %477 = vmatpush1.msra.mxu0 0.0
    %478 = vmatprep.subr.mxu0 0.0
    %479 = vmatpush1.msra.mxu0 0.0
    %480 = vmatprep.subr.mxu0 0.0
    %481 = vmatpush1.msra.mxu0 0.0
    %482 = vmatprep.subr.mxu0 0.0
    %483 = vmatpush1.msra.mxu0 0.0
    %484 = vmatprep.subr.mxu0 0.0
    %485 = vmatpush1.msra.mxu0 0.0
    %486 = vmatprep.subr.mxu0 0.0
    %487 = vmatpush1.msra.mxu0 0.0
    %488 = vmatprep.subr.mxu0 0.0
    %489 = vmatpush1.msra.mxu0 0.0
    %490 = vmatprep.subr.mxu0 0.0
    %491 = vmatpush1.msra.mxu0 0.0
    %492 = vmatprep.subr.mxu0 0.0
    %493 = vmatpush1.msra.mxu0 0.0
    %494 = vmatprep.subr.mxu0 0.0
    %495 = vmatpush1.msra.mxu0 0.0
    %496 = vmatprep.subr.mxu0 0.0
    %497 = vmatpush1.msra.mxu0 0.0
    %498 = vmatprep.subr.mxu0 0.0
    %499 = vmatpush1.msra.mxu0 0.0
    %500 = vmatprep.subr.mxu0 0.0
    %501 = vmatpush1.msra.mxu0 0.0
    %502 = vmatprep.subr.mxu0 0.0
    %503 = vmatpush1.msra.mxu0 0.0
    %504 = vmatprep.subr.mxu0 0.0
    %505 = vmatpush1.msra.mxu0 0.0
    %506 = vmatprep.subr.mxu0 0.0
    %507 = vmatpush1.msra.mxu0 0.0
    %508 = vmatprep.subr.mxu0 0.0
    %509 = vmatpush1.msra.mxu0 0.0
    %510 = vmatprep.subr.mxu0 0.0
    %511 = vmatpush1.msra.mxu0 0.0
    %512 = vmatprep.subr.mxu0 0.0
    %513 = vmatpush1.msra.mxu0 0.0
    %514 = vmatprep.subr.mxu0 0.0
    %515 = vmatpush1.msra.mxu0 0.0
    %516 = vmatprep.subr.mxu0 0.0
    %517 = vmatpush1.msra.mxu0 0.0
    %518 = vmatprep.mubr.f32.mxu0 0.0
    %519 = vmatmul.mubr.f32.gmra.mrb[0].mxu0 %v363
    %v520 = vpop.f32.mrb[0].mxu0
    %v521 = vadd.f32 0.0, %v520
    %v522 = vpop.f32.mrb[0].mxu0
    %v523 = vadd.f32 0.0, %v522
    %524 = vmatprep.mubr.f32.mxu0 0.0
    %525 = vmatmul.mubr.f32.gmra.mrb[0].mxu0 %v366
    %v526 = vpop.f32.mrb[0].mxu0
    %v527 = vadd.f32 0.0, %v526
    %v528 = vpop.f32.mrb[0].mxu0
    %v529 = vadd.f32 0.0, %v528
    %530 = vdwg.mxu0
    %v531 = vmul.f32 %v444, %v263
    %v532 = vmul.f32 %v446, %v265
    %v533 = vmul.f32 %v521, %v306
    %v534 = vmul.f32 %v523, %v308
    %v535 = vmul.f32 %v450, %v267
    %v536 = vmul.f32 %v452, %v269
    %v537 = vmul.f32 %v527, %v310
    %v538 = vmul.f32 %v529, %v312
    %v539 = vadd.f32 %v531, %v532
    %v540 = vadd.f32 %v535, %v536
    %v541 = vadd.f32 %v539, %v533
    %v542 = vadd.f32 %v540, %v537
    %v543 = vadd.f32 %v541, %v534
    %v544 = vadd.f32 %v542, %v538
    %545 = vst [vmem:[#allocation8] sm:$0xff] %v543
    %546 = vst [vmem:[#allocation8 + $0x8] sm:$0xff] %v544
    // Predicated region
    $region26: #{tpu_custom_call.1} parent=1 // pred_check
      _
    $region27: #{tpu_custom_call.1} parent=1 // pred_check_branch
      %548 = sbr.rel (0) target = $region29
    $region28: #{tpu_custom_call.1} parent=1 // pred_region
      %s550 = ssub.s32 256, 256
      %551 = vsyncadd [#allocation4], %s550
      %s552 = sshll.u32 [#allocation8], 4
      %s553 = int_to_ptr.vmem [resolvable:$true] %s552
      %558 = dma.vmem_to_hbm [thread:$0]  %s553, 256, %s3, [#allocation4], 128, 128, 8
    $region29: #{tpu_custom_call.1} parent=1 // pred_fallthru
      _
    // Predicated region
    $region30: #{tpu_custom_call.1} parent=1 // pred_check
      _
    $region31: #{tpu_custom_call.1} parent=1 // pred_check_branch
      %560 = sbr.rel (0) target = $region33
    $region32: #{tpu_custom_call.1} parent=1 // pred_region
      %561 = dma.done [#allocation4], 256
    $region33: #{tpu_custom_call.1} parent=1 // pred_fallthru
      _
    %562 = vsyncpa [#allocation3], 1
    %563 = vsyncpa [#allocation6], 1
    %564 = vsyncpa [#allocation4], 1

</llo_original>
